<compile_context>
chip_gen: v7x
topology: tpu7x:2x2x1
jax: 0.10.0
libtpu: 0.0.40
codegen_flags: <defaults>
</compile_context>

<pallas_src>
import functools

import jax
import jax.numpy as jnp
from jax.experimental import pallas as pl
from jax.experimental.pallas import tpu as pltpu


_LANE_CANDIDATES = (1024, 512, 256, 128)   # lane-dense last-dim choices
_MIN_PALLAS_BYTES = 1 << 20                # below ~1 MiB, plain XLA fusion wins


def _device_profile():
    """Return (per_buffer_bytes, min_grid_steps, vmem_limit_bytes|None, bf16_native_ok)."""
    kind = ""
    try:
        kind = jax.devices()[0].device_kind.lower()
    except Exception:
        pass
    if "7x" in kind or "v7" in kind:
        # v7x: 3.2 TB/s HBM, 64 MiB VMEM/TC, 2 TCs/chip -> big tiles + explicit
        # VMEM limit; >=4 (even) grid steps so both TensorCores pull DMAs and
        # in/out DMA overlap exists even for medium payloads.
        return 8 << 20, 4, 56 << 20, True
    if "v6" in kind or "6e" in kind or "trillium" in kind:
        # v6e: 4 MiB tiles -> 24 MiB double-buffered footprint, fits the 32 MiB
        # scoped-VMEM default with no flag change.
        return 4 << 20, 2, None, True
    # v5e / unknown: stay safely under the 16 MiB scoped-VMEM default; no bf16 VPU.
    return 2 << 20, 2, None, False


def _choose_tile_rows(rows, lanes, itemsize, per_buffer_bytes, min_steps):
    """Byte-budget-driven tile rows, rounded to sublane packing, >= min_steps steps."""
    pack = max(8, 32 // itemsize)            # sublane packing: f32->8, bf16->16, int8->32
    tr_budget = max(pack, (per_buffer_bytes // (lanes * itemsize)) // pack * pack)
    if rows <= pack * min_steps:
        return rows                          # too small to split; full-extent block is legal
    steps = max(pl.cdiv(rows, tr_budget), min_steps)
    if min_steps >= 4 and steps % 2:         # even step count keeps both TCs busy on v7x
        steps += 1
    tr = pl.cdiv(pl.cdiv(rows, steps), pack) * pack
    return min(tr, rows)


def _blend_kernel(alpha_ref, x1_ref, x2_ref, o_ref, *, compute_dtype):
    # alpha_ref: SMEM f32 scalar (shape (1,)); x1/x2/o: lane-dense VMEM tiles.
    a = alpha_ref[0].astype(compute_dtype)
    x1 = x1_ref[...].astype(compute_dtype)   # no-op when compute_dtype == input dtype
    x2 = x2_ref[...].astype(compute_dtype)
    o_ref[...] = (a * x1 + (1.0 - a) * x2).astype(o_ref.dtype)


def _blend_pallas_2d(x1_2d, x2_2d, alpha_arr, compute_dtype,
                     per_buffer_bytes, min_steps, vmem_limit):
    rows, lanes = x1_2d.shape
    itemsize = jnp.dtype(x1_2d.dtype).itemsize
    tr = _choose_tile_rows(rows, lanes, itemsize, per_buffer_bytes, min_steps)
    grid = (pl.cdiv(rows, tr),)

    n_elems = rows * lanes
    cost = pl.CostEstimate(
        flops=3 * n_elems,                   # 2 mul + 1 add per element
        transcendentals=0,
        bytes_accessed=3 * n_elems * itemsize,
    )

    cp_kwargs = dict(dimension_semantics=("parallel",))
    if vmem_limit is not None:
        cp_kwargs["vmem_limit_bytes"] = int(vmem_limit)

    kernel = functools.partial(_blend_kernel, compute_dtype=compute_dtype)
    return pl.pallas_call(
        kernel,
        out_shape=jax.ShapeDtypeStruct((rows, lanes), x1_2d.dtype),
        grid_spec=pl.GridSpec(
            grid=grid,
            in_specs=[
                pl.BlockSpec(memory_space=pltpu.MemorySpace.SMEM),  # alpha scalar
                pl.BlockSpec((tr, lanes), lambda i: (i, 0)),
                pl.BlockSpec((tr, lanes), lambda i: (i, 0)),
            ],
            out_specs=pl.BlockSpec((tr, lanes), lambda i: (i, 0)),
        ),
        compiler_params=pltpu.CompilerParams(**cp_kwargs),
        cost_estimate=cost,
    )(alpha_arr, x1_2d, x2_2d)


def _blend_jax(x1, x2, alpha_f32):
    return (alpha_f32 * x1.astype(jnp.float32)
            + (1.0 - alpha_f32) * x2.astype(jnp.float32)).astype(x1.dtype)


def keyframe_projector(x1, x2, alpha, *, force_pallas=False):
    """out = alpha * x1 + (1 - alpha) * x2, elementwise, scalar alpha."""
    assert x1.shape == x2.shape and x1.dtype == x2.dtype
    orig_shape = x1.shape
    total = x1.size
    itemsize = jnp.dtype(x1.dtype).itemsize
    alpha_f32 = jnp.asarray(alpha, dtype=jnp.float32)

    # Tiny inputs: per-step overhead isn't worth it; let XLA fuse the blend.
    if not force_pallas and total * itemsize < _MIN_PALLAS_BYTES:
        return _blend_jax(x1, x2, alpha_f32)

    # Pick a lane-dense last dim (large multiple of 128) dividing the element
    # count; elementwise semantics make any reshape legal.
    lanes = None
    for cand in _LANE_CANDIDATES:
        if total % cand == 0:
            lanes = cand
            break
    if lanes is None:
        return _blend_jax(x1, x2, alpha_f32)

    per_buffer_bytes, min_steps, vmem_limit, bf16_native = _device_profile()
    if x1.dtype == jnp.bfloat16 and bf16_native:
        compute_dtype = jnp.bfloat16         # native bf16 VALU on v6e/v7x
    else:
        compute_dtype = jnp.float32          # f32 inputs: no-op; others widened

    rows = total // lanes
    out = _blend_pallas_2d(
        x1.reshape(rows, lanes),
        x2.reshape(rows, lanes),
        alpha_f32.reshape(1),
        compute_dtype,
        per_buffer_bytes,
        min_steps,
        vmem_limit,
    )
    return out.reshape(orig_shape)


if __name__ == "__main__":
    key = jax.random.PRNGKey(0)
    k1, k2, k3, k4, k5, k6 = jax.random.split(key, 6)

    # Deterministic parameter init, matching nn.Parameter(torch.tensor(0.5)).
    alpha = jnp.float32(0.5)

    # (1) Small shape consistent with the module (batch=2, seq=8, hidden=32);
    #     force the Pallas path so the kernel itself runs at least once.
    B, S, D = 2, 8, 32
    x1 = jax.random.normal(k1, (B, S, D), dtype=jnp.float32)
    x2 = jax.random.normal(k2, (B, S, D), dtype=jnp.float32)
    out = jax.block_until_ready(
        keyframe_projector(x1, x2, alpha, force_pallas=True))
    ref = alpha * x1 + (1.0 - alpha) * x2
    assert out.shape == x1.shape and out.dtype == x1.dtype
    assert jnp.allclose(out, ref, atol=1e-6, rtol=1e-6)

    # (2) Larger f32 shape exercising the multi-step tiled grid.
    y1 = jax.random.normal(k3, (4, 1024, 1024), dtype=jnp.float32)
    y2 = jax.random.normal(k4, (4, 1024, 1024), dtype=jnp.float32)
    out2 = jax.block_until_ready(keyframe_projector(y1, y2, alpha))
    ref2 = alpha * y1 + (1.0 - alpha) * y2
    assert out2.shape == y1.shape and out2.dtype == y1.dtype
    assert jnp.allclose(out2, ref2, atol=1e-6, rtol=1e-6)

    # (3) bf16 input: exercises native-bf16 compute on v6e/v7x (f32 on v5e).
    z1 = jax.random.normal(k5, (2, 1024, 1024), dtype=jnp.bfloat16)
    z2 = jax.random.normal(k6, (2, 1024, 1024), dtype=jnp.bfloat16)
    out3 = jax.block_until_ready(keyframe_projector(z1, z2, alpha))
    ref3 = (alpha * z1.astype(jnp.float32)
            + (1.0 - alpha) * z2.astype(jnp.float32)).astype(jnp.bfloat16)
    assert out3.shape == z1.shape and out3.dtype == z1.dtype
    assert jnp.allclose(out3.astype(jnp.float32), ref3.astype(jnp.float32),
                        atol=6e-2, rtol=6e-2)

    print("KERNEL_OK")
</pallas_src>

<mosaic_0001>
module attributes {stable_mosaic.version = 11 : i64} {
  func.func @_blend_kernel(%arg0: i32, %arg1: memref<1xf32, #tpu.memory_space<smem>>, %arg2: memref<1x512xf32, #tpu.memory_space<vmem>>, %arg3: memref<1x512xf32, #tpu.memory_space<vmem>>, %arg4: memref<1x512xf32, #tpu.memory_space<vmem>>) attributes {dimension_semantics = [#tpu.dimension_semantics<parallel>], iteration_bounds = array<i64: 1>, scalar_prefetch = 0 : i64, scratch_operands = 0 : i64, tpu.core_type = #tpu.core_type<tc>, window_params = [{transform_indices = @transform_0, window_bounds = array<i64: 1>}, {transform_indices = @transform_1, window_bounds = array<i64: 1, 512>}, {transform_indices = @transform_2, window_bounds = array<i64: 1, 512>}, {transform_indices = @transform_3, window_bounds = array<i64: 1, 512>}]} {
    %c0 = arith.constant 0 : index
    %0 = memref.load %arg1[%c0] : memref<1xf32, #tpu.memory_space<smem>>
    %c0_0 = arith.constant 0 : index
    %c0_1 = arith.constant 0 : index
    %1 = vector.load %arg2[%c0_0, %c0_1] : memref<1x512xf32, #tpu.memory_space<vmem>>, vector<1x512xf32>
    %c0_2 = arith.constant 0 : index
    %c0_3 = arith.constant 0 : index
    %2 = vector.load %arg3[%c0_2, %c0_3] : memref<1x512xf32, #tpu.memory_space<vmem>>, vector<1x512xf32>
    %3 = vector.broadcast %0 : f32 to vector<1x512xf32>
    %4 = arith.mulf %3, %1 : vector<1x512xf32>
    %cst = arith.constant 1.000000e+00 : f32
    %5 = arith.subf %cst, %0 : f32
    %6 = vector.broadcast %5 : f32 to vector<1x512xf32>
    %7 = arith.mulf %6, %2 : vector<1x512xf32>
    %8 = arith.addf %4, %7 : vector<1x512xf32>
    %c0_4 = arith.constant 0 : index
    %c0_5 = arith.constant 0 : index
    %9 = vector.load %arg4[%c0_4, %c0_5] : memref<1x512xf32, #tpu.memory_space<vmem>>, vector<1x512xf32>
    tpu.vector_store %arg4[%c0_4, %c0_5], %8 {strides = array<i32>} : memref<1x512xf32, #tpu.memory_space<vmem>>, vector<1x512xf32>,
    return
  }
  func.func @transform_0(%arg0: i32) -> i32 {
    %c0_i32 = arith.constant 0 : i32
    %c0_i32_0 = arith.constant 0 : i32
    return %c0_i32 : i32
  }
  func.func @transform_1(%arg0: i32) -> (i32, i32) {
    %c0_i32 = arith.constant 0 : i32
    %c0_i32_0 = arith.constant 0 : i32
    return %arg0, %c0_i32 : i32, i32
  }
  func.func @transform_2(%arg0: i32) -> (i32, i32) {
    %c0_i32 = arith.constant 0 : i32
    %c0_i32_0 = arith.constant 0 : i32
    return %arg0, %c0_i32 : i32, i32
  }
  func.func @transform_3(%arg0: i32) -> (i32, i32) {
    %c0_i32 = arith.constant 0 : i32
    %c0_i32_0 = arith.constant 0 : i32
    return %arg0, %c0_i32 : i32, i32
  }
}

</mosaic_0001>

<llo_original>
// kernel: tpu_custom_call.1
$region0: #{tpu_custom_call.1}
  #allocation0 [shape = 'u32[]', space=smem, size = 0x4, offset = 0x4, fixed_abs, tag = 'smem constant byte address 0x4 - core index']
  #allocation1 [shape = 'u32[144,128]{1,0:T(1,128)}', space=vmem, size = 0x12000, scoped, tag = 'internal scratch']
  #allocation2 [shape = 'f32[1]{0:T(128)S(6)}', space=smem, size = 0x200, scoped, tag = 'scoped memory for tpu_custom_call.1']
  %s0 = inlined_call_operand.<no memory space> [shape: f32[1], index: 0, kind: input, shape index: {}]
  %s1 = inlined_call_operand.hbm [shape: f32[1,512], index: 1, kind: input, shape index: {}]
  %s2 = inlined_call_operand.vmem [shape: f32[1,512], index: 2, kind: input, shape index: {}]
  %s3 = inlined_call_operand.hbm [shape: f32[1,512], index: 3, kind: output, shape index: {}]
  %s4 = sld [smem:[#allocation0]]
  $region26: #{tpu_custom_call.1} parent=0
    _
  %s6 = ssub.s32 1, %s4
  %s7 = scalar_select 0, %s6, %s4
  %8 = sst [smem:[#allocation2]] %s0
  $region1: #{tpu_custom_call.1} parent=0
    #allocation3 [shape = 'u8[2048]{0}', space=vmem, size = 0x800, scoped, tag = 'input window, operand 1, single buffered']
    #allocation4 [shape = 's32[1]{0}', space=sflag, size = 0x4, scoped, tag = 'scoped memory for tpu_custom_call.1']
    #allocation5 [shape = 's32[1]{0}', space=sflag, size = 0x4, scoped, tag = 'scoped memory for tpu_custom_call.1']
    #allocation6 [shape = 'u8[2048]{0}', space=vmem, size = 0x800, scoped, tag = 'output window, operand 0, single buffered']
    %9 = vsyncpa [#allocation4], 0
    %10 = vsyncpa [#allocation5], 0
    // Predicated region
    $region2: #{tpu_custom_call.1} parent=1 // pred_check
      _
    $region3: #{tpu_custom_call.1} parent=1 // pred_check_branch
      %12 = sbr.rel (0) target = $region5
    $region4: #{tpu_custom_call.1} parent=1 // pred_region
      _
    $region5: #{tpu_custom_call.1} parent=1 // pred_fallthru
      _
    // Predicated region
    $region6: #{tpu_custom_call.1} parent=1 // pred_check
      _
    $region7: #{tpu_custom_call.1} parent=1 // pred_check_branch
      %14 = sbr.rel (0) target = $region9
    $region8: #{tpu_custom_call.1} parent=1 // pred_region
      %s16 = ssub.s32 64, 64
      %17 = vsyncadd [#allocation4], %s16
      %s19 = sshll.u32 [#allocation3], 4
      %s20 = int_to_ptr.vmem [resolvable:$true] %s19
      %22 = dma.hbm_to_vmem [thread:$0]  %s1, 64, %s20, [#allocation4]
    $region9: #{tpu_custom_call.1} parent=1 // pred_fallthru
      _
    // Predicated region
    $region10: #{tpu_custom_call.1} parent=1 // pred_check
      _
    $region11: #{tpu_custom_call.1} parent=1 // pred_check_branch
      %24 = sbr.rel (0) target = $region13
    $region12: #{tpu_custom_call.1} parent=1 // pred_region
      _
    $region13: #{tpu_custom_call.1} parent=1 // pred_fallthru
      _
    // Predicated region
    $region14: #{tpu_custom_call.1} parent=1 // pred_check
      _
    $region15: #{tpu_custom_call.1} parent=1 // pred_check_branch
      %26 = sbr.rel (0) target = $region17
    $region16: #{tpu_custom_call.1} parent=1 // pred_region
      %27 = dma.done [#allocation4], 64
    $region17: #{tpu_custom_call.1} parent=1 // pred_fallthru
      _
    %s28 = sld [smem:[#allocation2]]
    %v29 = vld [vmem:[#allocation3] sm:$0xf]
    %v30 = vld [vmem:[%s2] sm:$0xf]
    %v31 = vstv %s28
    %v32 = vmul.f32 %v31, %v29
    %s33 = ssub.f32 1.0, %s28
    %v34 = vstv %s33
    %v35 = vmul.f32 %v34, %v30
    %v36 = vadd.f32 %v32, %v35
    %v37 = vlaneseq
    %vm38 = vcmp.ge.s32.totalorder %v37, 0
    %vm39 = vcmp.lt.s32.totalorder %v37, 512
    %vm40 = vmand %vm38, %vm39
    %41 = vst.msk [vmem:[#allocation6] sm:$0xf] %vm40, %v36
    // Predicated region
    $region18: #{tpu_custom_call.1} parent=1 // pred_check
      _
    $region19: #{tpu_custom_call.1} parent=1 // pred_check_branch
      %43 = sbr.rel (0) target = $region21
    $region20: #{tpu_custom_call.1} parent=1 // pred_region
      %s45 = ssub.s32 64, 64
      %46 = vsyncadd [#allocation5], %s45
      %s48 = sshll.u32 [#allocation6], 4
      %s49 = int_to_ptr.vmem [resolvable:$true] %s48
      %51 = dma.vmem_to_hbm [thread:$0]  %s49, 64, %s3, [#allocation5]
    $region21: #{tpu_custom_call.1} parent=1 // pred_fallthru
      _
    // Predicated region
    $region22: #{tpu_custom_call.1} parent=1 // pred_check
      _
    $region23: #{tpu_custom_call.1} parent=1 // pred_check_branch
      %53 = sbr.rel (0) target = $region25
    $region24: #{tpu_custom_call.1} parent=1 // pred_region
      %54 = dma.done [#allocation5], 64
    $region25: #{tpu_custom_call.1} parent=1 // pred_fallthru
      _
    %55 = vsyncpa [#allocation4], 1
    %56 = vsyncpa [#allocation5], 1

</llo_original>
